<compile_context>
chip_gen: v6e
topology: v6e:2x2x1
jax: 0.10.0
libtpu: 0.0.40
codegen_flags: <defaults>
</compile_context>

<pallas_src>
import functools

import jax
import jax.numpy as jnp
from jax.experimental import pallas as pl
from jax.experimental.pallas import tpu as pltpu


def _round_up(x, m):
    return ((x + m - 1) // m) * m


def _align_loss_kernel(nv_pad, moment,
                       views_ref, vars_ref, cm_ref, cs_ref,
                       loss_ref, new_cm_ref, new_cs_ref):
    x = vars_ref[...]                      # (BS, Ct) f32 — current class tile
    views = views_ref[...]                 # (1, BS) int32 (resident across grid)
    cm = cm_ref[...]                       # (1, Ct)
    cs = cs_ref[...]                       # (1, Ct)
    bs = x.shape[0]

    # One-hot view-membership mask (NV_pad, BS). Padded view ids get cnt == 0
    # and are dropped by `valid` below.
    vid = jax.lax.broadcasted_iota(jnp.int32, (nv_pad, bs), 0)
    mask = (vid == views).astype(jnp.float32)                 # (NV, BS)
    cnt = jnp.sum(mask, axis=1, keepdims=True)                # (NV, 1)

    # Exact divisions: these live on ~NV scalars, approx rcp buys nothing.
    inv_cnt = 1.0 / jnp.maximum(cnt, 1.0)                     # (NV, 1)
    inv_cnt1 = 1.0 / jnp.maximum(cnt - 1.0, 1.0)              # (NV, 1)

    # Mean-shift by the global batch mean to tame E[x^2]-E[x]^2 cancellation,
    # then two MXU dots sharing the mask LHS (no concat temporary).  Used for
    # every batch size: at small BS the matmul is a handful of MXU pushes and
    # still beats NV*BS*Ct VPU passes on v6e/v7x.
    shift = jnp.mean(x, axis=0, keepdims=True)                # (1, Ct)
    xs = x - shift                                            # (BS, Ct)
    sums_s = jnp.dot(mask, xs, preferred_element_type=jnp.float32)       # (NV, Ct)
    sq_s = jnp.dot(mask, xs * xs, preferred_element_type=jnp.float32)    # (NV, Ct)
    mean_s = sums_s * inv_cnt                                 # (NV, Ct)
    var_v = (sq_s - cnt * mean_s * mean_s) * inv_cnt1         # unbiased (ddof=1)
    mean_v = mean_s + shift                                   # (NV, Ct)
    std_v = jnp.sqrt(jnp.maximum(var_v, 0.0))                 # (NV, Ct)

    # Views with fewer than 2 samples are skipped (as in the torch loop).
    valid = (cnt >= 2.0).astype(jnp.float32)                  # (NV, 1)
    k = jnp.maximum(jnp.sum(valid, keepdims=True), 1.0)       # (1, 1)
    inv_k = 1.0 / k                                           # (1, 1)

    # _update_centers: EMA with the mean over valid views.
    new_mean = jnp.sum(valid * mean_v, axis=0, keepdims=True) * inv_k   # (1, Ct)
    new_std = jnp.sum(valid * std_v, axis=0, keepdims=True) * inv_k     # (1, Ct)
    m = jnp.float32(moment)
    cm_upd = cm * (1.0 - m) + new_mean * m
    cs_upd = cs * (1.0 - m) + new_std * m
    new_cm_ref[...] = cm_upd
    new_cs_ref[...] = cs_upd

    # Per-tile loss contribution: mean over the 2K stacked terms == total/(2K).
    # The class-axis sum is separable, so summing per-tile partials in the
    # wrapper reconstructs the full loss.
    dmean = mean_v - cm_upd
    dstd = std_v - cs_upd
    total = jnp.sum(valid * (dmean * dmean + dstd * dstd))
    tile_loss = total * (0.5 * inv_k[0, 0])

    # Lane-dense (1,128) block per tile (value in lane 0, zeros elsewhere) so
    # the output stays pipelined / megacore-safe and the store is unmasked.
    lane = jax.lax.broadcasted_iota(jnp.int32, (1, 128), 1)
    loss_ref[...] = jnp.where(lane == 0, tile_loss, 0.0).astype(jnp.float32)


def _pick_tile(c128, bs, nv_pad):
    """Largest 128-multiple tile that divides c128 and fits the VMEM budget."""
    # Rough live working set per class column (bytes):
    #   2x double-buffered x tile + xs + xs*xs + per-view stats + centers.
    per_col = 4 * (4 * bs + 8 * nv_pad + 16)
    vmem_target = 24 * 1024 * 1024          # conservative: fits v5e/v6e/v7x
    max_cols = max(128, (vmem_target // per_col) // 128 * 128)
    if c128 <= max_cols:
        return c128
    units = c128 // 128
    max_units = max(1, max_cols // 128)
    best = 1
    for d in range(1, max_units + 1):
        if units % d == 0:
            best = d
    return best * 128


def align_loss(variables, views, center_mean, center_std, *, n_views, moment):
    """Returns (loss, updated_center_mean, updated_center_std)."""
    variables = jnp.asarray(variables, jnp.float32)
    bs, c = variables.shape

    nv_pad = _round_up(max(int(n_views), 1), 8)      # full sublanes for the mask
    c_pad = _round_up(c, 128)                        # lane-dense class axis
    tile_c = _pick_tile(c_pad, bs, nv_pad)           # divides c_pad exactly
    num_tiles = c_pad // tile_c

    views2d = jnp.asarray(views, jnp.int32).reshape(1, bs)
    cm2 = jnp.asarray(center_mean, jnp.float32).reshape(1, c)
    cs2 = jnp.asarray(center_std, jnp.float32).reshape(1, c)
    if c_pad != c:
        x_in = jnp.pad(variables, ((0, 0), (0, c_pad - c)))
        cm_in = jnp.pad(cm2, ((0, 0), (0, c_pad - c)))
        cs_in = jnp.pad(cs2, ((0, 0), (0, c_pad - c)))
    else:  # skip the extra HBM pass when C is already lane-aligned
        x_in, cm_in, cs_in = variables, cm2, cs2

    kernel = functools.partial(_align_loss_kernel, nv_pad, float(moment))
    cost = pl.CostEstimate(
        flops=4 * nv_pad * bs * c_pad + 8 * bs * c_pad,
        transcendentals=nv_pad * c_pad,
        bytes_accessed=4 * (bs * c_pad + 4 * c_pad + bs + 128 * num_tiles),
    )

    loss_parts, new_cm, new_cs = pl.pallas_call(
        kernel,
        grid=(num_tiles,),
        in_specs=[
            pl.BlockSpec((1, bs), lambda j: (0, 0)),         # views (resident)
            pl.BlockSpec((bs, tile_c), lambda j: (0, j)),    # variables tile
            pl.BlockSpec((1, tile_c), lambda j: (0, j)),     # center_mean tile
            pl.BlockSpec((1, tile_c), lambda j: (0, j)),     # center_std tile
        ],
        out_specs=(
            pl.BlockSpec((1, 128), lambda j: (0, j)),        # per-tile loss row
            pl.BlockSpec((1, tile_c), lambda j: (0, j)),
            pl.BlockSpec((1, tile_c), lambda j: (0, j)),
        ),
        out_shape=(
            jax.ShapeDtypeStruct((1, 128 * num_tiles), jnp.float32),
            jax.ShapeDtypeStruct((1, c_pad), jnp.float32),
            jax.ShapeDtypeStruct((1, c_pad), jnp.float32),
        ),
        input_output_aliases={2: 1, 3: 2},   # cm -> new_cm, cs -> new_cs
        compiler_params=pltpu.CompilerParams(
            dimension_semantics=("parallel",),
            vmem_limit_bytes=48 * 1024 * 1024),
        cost_estimate=cost,
    )(views2d, x_in, cm_in, cs_in)

    loss = jnp.sum(loss_parts)               # only lane 0 of each block is non-zero
    return loss, new_cm[0, :c], new_cs[0, :c]


# ---------------- plain-JAX glue: init_centers + reference -------------------

def init_centers(variables, views, n_views):
    """Deterministic buffer init, mirroring AlignLoss.init_centers."""
    means, stds = [], []
    for v in range(n_views):
        sel = variables[views == v]
        if sel.shape[0] == 0:
            continue
        means.append(sel.mean(axis=0))
        stds.append(sel.std(axis=0, ddof=1))
    return jnp.stack(means).mean(axis=0), jnp.stack(stds).mean(axis=0)


def align_loss_reference(variables, views, cm, cs, *, n_views, moment):
    means, stds = [], []
    for v in range(n_views):
        sel = variables[views == v]
        if sel.shape[0] <= 1:
            continue
        means.append(sel.mean(axis=0))
        stds.append(sel.std(axis=0, ddof=1))
    new_mean = jnp.stack(means).mean(axis=0)
    new_std = jnp.stack(stds).mean(axis=0)
    cm = cm * (1 - moment) + new_mean * moment
    cs = cs * (1 - moment) + new_std * moment
    terms = []
    for v in range(n_views):
        sel = variables[views == v]
        if sel.shape[0] <= 1:
            continue
        terms.append(jnp.sum((sel.mean(axis=0) - cm) ** 2))
        terms.append(jnp.sum((sel.std(axis=0, ddof=1) - cs) ** 2))
    return jnp.stack(terms).mean(), cm, cs


if __name__ == "__main__":
    BS, C, NV = 8, 32, 4            # batch, n_class, number of distinct views
    moment = BS / 10000.0

    key = jax.random.PRNGKey(0)
    k1, k2 = jax.random.split(key)
    variables = jax.random.normal(k1, (BS, C), dtype=jnp.float32)
    views = jnp.array([0, 0, 1, 1, 2, 2, 3, 3], dtype=jnp.int32)

    # Deterministic buffer initialization (AlignLoss.init_centers on an init batch).
    init_vars = jax.random.normal(k2, (BS, C), dtype=jnp.float32)
    center_mean, center_std = init_centers(init_vars, views, NV)

    loss, new_cm, new_cs = align_loss(
        variables, views, center_mean, center_std, n_views=NV, moment=moment)
    jax.block_until_ready((loss, new_cm, new_cs))

    ref_loss, ref_cm, ref_cs = align_loss_reference(
        variables, views, center_mean, center_std, n_views=NV, moment=moment)
    assert jnp.allclose(loss, ref_loss, rtol=1e-3, atol=1e-3), (loss, ref_loss)
    assert jnp.allclose(new_cm, ref_cm, rtol=1e-3, atol=1e-3)
    assert jnp.allclose(new_cs, ref_cs, rtol=1e-3, atol=1e-3)

    print("KERNEL_OK")
</pallas_src>

<mosaic_0001>
module attributes {stable_mosaic.version = 11 : i64} {
  func.func @_align_loss_kernel(%arg0: i32, %arg1: memref<1x8xi32, #tpu.memory_space<vmem>>, %arg2: memref<8x128xf32, #tpu.memory_space<vmem>>, %arg3: memref<1x128xf32, #tpu.memory_space<vmem>>, %arg4: memref<1x128xf32, #tpu.memory_space<vmem>>, %arg5: memref<1x128xf32, #tpu.memory_space<vmem>>, %arg6: memref<1x128xf32, #tpu.memory_space<vmem>>, %arg7: memref<1x128xf32, #tpu.memory_space<vmem>>) attributes {dimension_semantics = [#tpu.dimension_semantics<parallel>], iteration_bounds = array<i64: 1>, scalar_prefetch = 0 : i64, scratch_operands = 0 : i64, tpu.core_type = #tpu.core_type<tc>, window_params = [{pipeline_mode = #tpu.pipeline_mode<synchronous>, transform_indices = @transform_0, window_bounds = array<i64: 1, 8>}, {transform_indices = @transform_1, window_bounds = array<i64: 8, 128>}, {transform_indices = @transform_2, window_bounds = array<i64: 1, 128>}, {transform_indices = @transform_3, window_bounds = array<i64: 1, 128>}, {transform_indices = @transform_4, window_bounds = array<i64: 1, 128>}, {transform_indices = @transform_5, window_bounds = array<i64: 1, 128>}, {transform_indices = @transform_6, window_bounds = array<i64: 1, 128>}]} {
    %c0 = arith.constant 0 : index
    %c0_0 = arith.constant 0 : index
    %0 = vector.load %arg2[%c0, %c0_0] : memref<8x128xf32, #tpu.memory_space<vmem>>, vector<8x128xf32>
    %c0_1 = arith.constant 0 : index
    %c0_2 = arith.constant 0 : index
    %1 = vector.load %arg1[%c0_1, %c0_2] : memref<1x8xi32, #tpu.memory_space<vmem>>, vector<1x8xi32>
    %c0_3 = arith.constant 0 : index
    %c0_4 = arith.constant 0 : index
    %2 = vector.load %arg3[%c0_3, %c0_4] : memref<1x128xf32, #tpu.memory_space<vmem>>, vector<1x128xf32>
    %c0_5 = arith.constant 0 : index
    %c0_6 = arith.constant 0 : index
    %3 = vector.load %arg4[%c0_5, %c0_6] : memref<1x128xf32, #tpu.memory_space<vmem>>, vector<1x128xf32>
    %4 = tpu.iota {dimensions = array<i32: 0>} : vector<8x8xi32>
    %5 = vector.broadcast %1 : vector<1x8xi32> to vector<8x8xi32>
    %6 = arith.cmpi eq, %4, %5 : vector<8x8xi32>
    %7 = arith.extui %6 : vector<8x8xi1> to vector<8x8xi32>
    %8 = arith.sitofp %7 : vector<8x8xi32> to vector<8x8xf32>
    %cst = arith.constant dense<0.000000e+00> : vector<8xf32>
    %9 = vector.multi_reduction <add>, %8, %cst [1] : vector<8x8xf32> to vector<8xf32>
    %10 = vector.shape_cast %9 : vector<8xf32> to vector<8x1xf32>
    %cst_7 = arith.constant 1.000000e+00 : f32
    %11 = vector.broadcast %cst_7 : f32 to vector<8x1xf32>
    %12 = arith.maximumf %10, %11 : vector<8x1xf32>
    %cst_8 = arith.constant 1.000000e+00 : f32
    %13 = vector.broadcast %cst_8 : f32 to vector<8x1xf32>
    %14 = arith.divf %13, %12 : vector<8x1xf32>
    %cst_9 = arith.constant 1.000000e+00 : f32
    %15 = vector.broadcast %cst_9 : f32 to vector<8x1xf32>
    %16 = arith.subf %10, %15 : vector<8x1xf32>
    %cst_10 = arith.constant 1.000000e+00 : f32
    %17 = vector.broadcast %cst_10 : f32 to vector<8x1xf32>
    %18 = arith.maximumf %16, %17 : vector<8x1xf32>
    %cst_11 = arith.constant 1.000000e+00 : f32
    %19 = vector.broadcast %cst_11 : f32 to vector<8x1xf32>
    %20 = arith.divf %19, %18 : vector<8x1xf32>
    %cst_12 = arith.constant dense<0.000000e+00> : vector<128xf32>
    %21 = vector.multi_reduction <add>, %0, %cst_12 [0] : vector<8x128xf32> to vector<128xf32>
    %22 = vector.shape_cast %21 : vector<128xf32> to vector<1x128xf32>
    %cst_13 = arith.constant 8.000000e+00 : f32
    %23 = vector.broadcast %cst_13 : f32 to vector<1x128xf32>
    %24 = arith.divf %22, %23 : vector<1x128xf32>
    %25 = vector.broadcast %24 : vector<1x128xf32> to vector<8x128xf32>
    %26 = arith.subf %0, %25 : vector<8x128xf32>
    %cst_14 = arith.constant dense<0.000000e+00> : vector<8x128xf32>
    %27 = tpu.matmul %8, %26, %cst_14 {dimension_numbers = #tpu.dot_dimension_numbers<[1], [0], [0], [1], [0, 0, 1, 1], [], []>} : vector<8x8xf32>, vector<8x128xf32>, vector<8x128xf32> -> vector<8x128xf32>
    %28 = arith.mulf %26, %26 : vector<8x128xf32>
    %cst_15 = arith.constant dense<0.000000e+00> : vector<8x128xf32>
    %29 = tpu.matmul %8, %28, %cst_15 {dimension_numbers = #tpu.dot_dimension_numbers<[1], [0], [0], [1], [0, 0, 1, 1], [], []>} : vector<8x8xf32>, vector<8x128xf32>, vector<8x128xf32> -> vector<8x128xf32>
    %30 = vector.broadcast %14 : vector<8x1xf32> to vector<8x128xf32>
    %31 = arith.mulf %27, %30 : vector<8x128xf32>
    %32 = vector.broadcast %10 : vector<8x1xf32> to vector<8x128xf32>
    %33 = arith.mulf %32, %31 : vector<8x128xf32>
    %34 = arith.mulf %33, %31 : vector<8x128xf32>
    %35 = arith.subf %29, %34 : vector<8x128xf32>
    %36 = vector.broadcast %20 : vector<8x1xf32> to vector<8x128xf32>
    %37 = arith.mulf %35, %36 : vector<8x128xf32>
    %38 = vector.broadcast %24 : vector<1x128xf32> to vector<8x128xf32>
    %39 = arith.addf %31, %38 : vector<8x128xf32>
    %cst_16 = arith.constant 0.000000e+00 : f32
    %40 = vector.broadcast %cst_16 : f32 to vector<8x128xf32>
    %41 = arith.maximumf %37, %40 : vector<8x128xf32>
    %42 = math.sqrt %41 : vector<8x128xf32>
    %cst_17 = arith.constant 2.000000e+00 : f32
    %43 = vector.broadcast %cst_17 : f32 to vector<8x1xf32>
    %44 = arith.cmpf oge, %10, %43 : vector<8x1xf32>
    %45 = arith.extui %44 : vector<8x1xi1> to vector<8x1xi32>
    %46 = arith.sitofp %45 : vector<8x1xi32> to vector<8x1xf32>
    %47 = vector.shape_cast %46 : vector<8x1xf32> to vector<1x8x1xf32>
    %cst_18 = arith.constant dense<0.000000e+00> : vector<1xf32>
    %48 = vector.multi_reduction <add>, %47, %cst_18 [1, 2] : vector<1x8x1xf32> to vector<1xf32>
    %49 = vector.shape_cast %48 : vector<1xf32> to vector<1x1x1xf32>
    %50 = vector.extract %49[0, 0, 0] : f32 from vector<1x1x1xf32>
    %51 = vector.broadcast %50 : f32 to vector<1x1xf32>
    %cst_19 = arith.constant 1.000000e+00 : f32
    %52 = vector.broadcast %cst_19 : f32 to vector<1x1xf32>
    %53 = arith.maximumf %51, %52 : vector<1x1xf32>
    %cst_20 = arith.constant 1.000000e+00 : f32
    %54 = vector.broadcast %cst_20 : f32 to vector<1x1xf32>
    %55 = arith.divf %54, %53 : vector<1x1xf32>
    %56 = vector.broadcast %46 : vector<8x1xf32> to vector<8x128xf32>
    %57 = arith.mulf %56, %39 : vector<8x128xf32>
    %cst_21 = arith.constant dense<0.000000e+00> : vector<128xf32>
    %58 = vector.multi_reduction <add>, %57, %cst_21 [0] : vector<8x128xf32> to vector<128xf32>
    %59 = vector.shape_cast %58 : vector<128xf32> to vector<1x128xf32>
    %60 = vector.broadcast %55 : vector<1x1xf32> to vector<1x128xf32>
    %61 = arith.mulf %59, %60 : vector<1x128xf32>
    %62 = vector.broadcast %46 : vector<8x1xf32> to vector<8x128xf32>
    %63 = arith.mulf %62, %42 : vector<8x128xf32>
    %cst_22 = arith.constant dense<0.000000e+00> : vector<128xf32>
    %64 = vector.multi_reduction <add>, %63, %cst_22 [0] : vector<8x128xf32> to vector<128xf32>
    %65 = vector.shape_cast %64 : vector<128xf32> to vector<1x128xf32>
    %66 = vector.broadcast %55 : vector<1x1xf32> to vector<1x128xf32>
    %67 = arith.mulf %65, %66 : vector<1x128xf32>
    %cst_23 = arith.constant 1.000000e+00 : f32
    %cst_24 = arith.constant 8.000000e-04 : f32
    %68 = arith.subf %cst_23, %cst_24 : f32
    %69 = vector.broadcast %68 : f32 to vector<1x128xf32>
    %70 = arith.mulf %2, %69 : vector<1x128xf32>
    %cst_25 = arith.constant 8.000000e-04 : f32
    %71 = vector.broadcast %cst_25 : f32 to vector<1x128xf32>
    %72 = arith.mulf %61, %71 : vector<1x128xf32>
    %73 = arith.addf %70, %72 : vector<1x128xf32>
    %cst_26 = arith.constant 1.000000e+00 : f32
    %cst_27 = arith.constant 8.000000e-04 : f32
    %74 = arith.subf %cst_26, %cst_27 : f32
    %75 = vector.broadcast %74 : f32 to vector<1x128xf32>
    %76 = arith.mulf %3, %75 : vector<1x128xf32>
    %cst_28 = arith.constant 8.000000e-04 : f32
    %77 = vector.broadcast %cst_28 : f32 to vector<1x128xf32>
    %78 = arith.mulf %67, %77 : vector<1x128xf32>
    %79 = arith.addf %76, %78 : vector<1x128xf32>
    %c0_29 = arith.constant 0 : index
    %c0_30 = arith.constant 0 : index
    %80 = vector.load %arg6[%c0_29, %c0_30] : memref<1x128xf32, #tpu.memory_space<vmem>>, vector<1x128xf32>
    tpu.vector_store %arg6[%c0_29, %c0_30], %73 {strides = array<i32>} : memref<1x128xf32, #tpu.memory_space<vmem>>, vector<1x128xf32>,
    %c0_31 = arith.constant 0 : index
    %c0_32 = arith.constant 0 : index
    %81 = vector.load %arg7[%c0_31, %c0_32] : memref<1x128xf32, #tpu.memory_space<vmem>>, vector<1x128xf32>
    tpu.vector_store %arg7[%c0_31, %c0_32], %79 {strides = array<i32>} : memref<1x128xf32, #tpu.memory_space<vmem>>, vector<1x128xf32>,
    %82 = vector.broadcast %73 : vector<1x128xf32> to vector<8x128xf32>
    %83 = arith.subf %39, %82 : vector<8x128xf32>
    %84 = vector.broadcast %79 : vector<1x128xf32> to vector<8x128xf32>
    %85 = arith.subf %42, %84 : vector<8x128xf32>
    %86 = arith.mulf %83, %83 : vector<8x128xf32>
    %87 = arith.mulf %85, %85 : vector<8x128xf32>
    %88 = arith.addf %86, %87 : vector<8x128xf32>
    %89 = vector.broadcast %46 : vector<8x1xf32> to vector<8x128xf32>
    %90 = arith.mulf %89, %88 : vector<8x128xf32>
    %91 = vector.shape_cast %90 : vector<8x128xf32> to vector<1x8x128xf32>
    %cst_33 = arith.constant dense<0.000000e+00> : vector<1xf32>
    %92 = vector.multi_reduction <add>, %91, %cst_33 [1, 2] : vector<1x8x128xf32> to vector<1xf32>
    %93 = vector.shape_cast %92 : vector<1xf32> to vector<1x1x1xf32>
    %94 = vector.extract %93[0, 0, 0] : f32 from vector<1x1x1xf32>
    %95 = vector.extract %55[0, 0] : f32 from vector<1x1xf32>
    %cst_34 = arith.constant 5.000000e-01 : f32
    %96 = arith.mulf %cst_34, %95 : f32
    %97 = arith.mulf %94, %96 : f32
    %98 = tpu.iota {dimensions = array<i32: 1>} : vector<1x128xi32>
    %c0_i32 = arith.constant 0 : i32
    %99 = vector.broadcast %c0_i32 : i32 to vector<1x128xi32>
    %100 = arith.cmpi eq, %98, %99 : vector<1x128xi32>
    %cst_35 = arith.constant 0.000000e+00 : f32
    %101 = vector.broadcast %97 : f32 to vector<1x128xf32>
    %102 = vector.broadcast %cst_35 : f32 to vector<1x128xf32>
    %103 = arith.select %100, %101, %102 : vector<1x128xi1>, vector<1x128xf32>
    %c0_36 = arith.constant 0 : index
    %c0_37 = arith.constant 0 : index
    %104 = vector.load %arg5[%c0_36, %c0_37] : memref<1x128xf32, #tpu.memory_space<vmem>>, vector<1x128xf32>
    tpu.vector_store %arg5[%c0_36, %c0_37], %103 {strides = array<i32>} : memref<1x128xf32, #tpu.memory_space<vmem>>, vector<1x128xf32>,
    return
  }
  func.func @transform_0(%arg0: i32) -> (i32, i32) {
    %c0_i32 = arith.constant 0 : i32
    %c0_i32_0 = arith.constant 0 : i32
    %c0_i32_1 = arith.constant 0 : i32
    return %c0_i32, %c0_i32_0 : i32, i32
  }
  func.func @transform_1(%arg0: i32) -> (i32, i32) {
    %c0_i32 = arith.constant 0 : i32
    %c0_i32_0 = arith.constant 0 : i32
    return %c0_i32, %arg0 : i32, i32
  }
  func.func @transform_2(%arg0: i32) -> (i32, i32) {
    %c0_i32 = arith.constant 0 : i32
    %c0_i32_0 = arith.constant 0 : i32
    return %c0_i32, %arg0 : i32, i32
  }
  func.func @transform_3(%arg0: i32) -> (i32, i32) {
    %c0_i32 = arith.constant 0 : i32
    %c0_i32_0 = arith.constant 0 : i32
    return %c0_i32, %arg0 : i32, i32
  }
  func.func @transform_4(%arg0: i32) -> (i32, i32) {
    %c0_i32 = arith.constant 0 : i32
    %c0_i32_0 = arith.constant 0 : i32
    return %c0_i32, %arg0 : i32, i32
  }
  func.func @transform_5(%arg0: i32) -> (i32, i32) {
    %c0_i32 = arith.constant 0 : i32
    %c0_i32_0 = arith.constant 0 : i32
    return %c0_i32, %arg0 : i32, i32
  }
  func.func @transform_6(%arg0: i32) -> (i32, i32) {
    %c0_i32 = arith.constant 0 : i32
    %c0_i32_0 = arith.constant 0 : i32
    return %c0_i32, %arg0 : i32, i32
  }
}

</mosaic_0001>

<llo_original>
// kernel: tpu_custom_call.1
$region0: #{tpu_custom_call.1}
  #allocation0 [shape = 'u32[]', space=smem, size = 0x4, offset = 0x4, fixed_abs, tag = 'smem constant byte address 0x4 - core index']
  #allocation1 [shape = 'u32[144,128]{1,0:T(1,128)}', space=vmem, size = 0x12000, scoped, tag = 'internal scratch']
  %s0 = inlined_call_operand.vmem [shape: s32[1,8], index: 0, kind: input, shape index: {}]
  %s1 = inlined_call_operand.hbm [shape: f32[8,128], index: 1, kind: input, shape index: {}]
  %s2 = inlined_call_operand.hbm [shape: f32[1,128], index: 2, kind: input, shape index: {}, may-alias: {2,5}]
  %s3 = inlined_call_operand.hbm [shape: f32[1,128], index: 3, kind: input, shape index: {}, may-alias: {3,6}]
  %s4 = inlined_call_operand.hbm [shape: f32[1,128], index: 4, kind: output, shape index: {0}]
  %s5 = inlined_call_operand.hbm [shape: f32[1,128], index: 5, kind: output, shape index: {1}, may-alias: {2,5}]
  %s6 = inlined_call_operand.hbm [shape: f32[1,128], index: 6, kind: output, shape index: {2}, may-alias: {3,6}]
  %7 = xla_tuple %s4, %s5, %s6
  %s8 = sld [smem:[#allocation0]]
  $region54: #{tpu_custom_call.1} parent=0
    _
  %s10 = ssub.s32 1, %s8
  %s11 = scalar_select 0, %s10, %s8
  $region1: #{tpu_custom_call.1} parent=0
    #allocation2 [shape = 'u8[4096]{0}', space=vmem, size = 0x1000, scoped, tag = 'input window, operand 1, single buffered']
    #allocation3 [shape = 's32[1]{0}', space=sflag, size = 0x4, scoped, tag = 'scoped memory for tpu_custom_call.1']
    #allocation4 [shape = 's32[1]{0}', space=sflag, size = 0x4, scoped, tag = 'scoped memory for tpu_custom_call.1']
    #allocation5 [shape = 'u8[512]{0}', space=vmem, size = 0x400, scoped, tag = 'input window, operand 2, single buffered']
    #allocation6 [shape = 's32[1]{0}', space=sflag, size = 0x4, scoped, tag = 'scoped memory for tpu_custom_call.1']
    #allocation7 [shape = 'u8[512]{0}', space=vmem, size = 0x400, scoped, tag = 'input window, operand 3, single buffered']
    #allocation8 [shape = 'u8[512]{0}', space=vmem, size = 0x400, scoped, tag = 'output window, operand 0, single buffered']
    #allocation9 [shape = 'u8[512]{0}', space=vmem, size = 0x400, scoped, tag = 'output window, operand 1, single buffered']
    #allocation10 [shape = 's32[1]{0}', space=sflag, size = 0x4, scoped, tag = 'scoped memory for tpu_custom_call.1']
    #allocation11 [shape = 'u8[512]{0}', space=vmem, size = 0x400, scoped, tag = 'output window, operand 2, single buffered']
    %12 = vsyncpa [#allocation3], 0
    %13 = vsyncpa [#allocation6], 0
    %14 = vsyncpa [#allocation4], 0
    %15 = vsyncpa [#allocation10], 0
    // Predicated region
    $region2: #{tpu_custom_call.1} parent=1 // pred_check
      _
    $region3: #{tpu_custom_call.1} parent=1 // pred_check_branch
      %17 = sbr.rel (0) target = $region5
    $region4: #{tpu_custom_call.1} parent=1 // pred_region
      _
    $region5: #{tpu_custom_call.1} parent=1 // pred_fallthru
      _
    // Predicated region
    $region6: #{tpu_custom_call.1} parent=1 // pred_check
      _
    $region7: #{tpu_custom_call.1} parent=1 // pred_check_branch
      %19 = sbr.rel (0) target = $region9
    $region8: #{tpu_custom_call.1} parent=1 // pred_region
      %s21 = ssub.s32 128, 128
      %22 = vsyncadd [#allocation3], %s21
      %s24 = sshll.u32 [#allocation2], 4
      %s25 = int_to_ptr.vmem [resolvable:$true] %s24
      %27 = dma.hbm_to_vmem [thread:$0]  %s1, 128, %s25, [#allocation3]
    $region9: #{tpu_custom_call.1} parent=1 // pred_fallthru
      _
    // Predicated region
    $region10: #{tpu_custom_call.1} parent=1 // pred_check
      _
    $region11: #{tpu_custom_call.1} parent=1 // pred_check_branch
      %29 = sbr.rel (0) target = $region13
    $region12: #{tpu_custom_call.1} parent=1 // pred_region
      %s31 = ssub.s32 16, 16
      %32 = vsyncadd [#allocation6], %s31
      %s34 = sshll.u32 [#allocation5], 4
      %s35 = int_to_ptr.vmem [resolvable:$true] %s34
      %37 = dma.hbm_to_vmem [thread:$0]  %s2, 16, %s35, [#allocation6]
    $region13: #{tpu_custom_call.1} parent=1 // pred_fallthru
      _
    // Predicated region
    $region14: #{tpu_custom_call.1} parent=1 // pred_check
      _
    $region15: #{tpu_custom_call.1} parent=1 // pred_check_branch
      %39 = sbr.rel (0) target = $region17
    $region16: #{tpu_custom_call.1} parent=1 // pred_region
      %s41 = ssub.s32 16, 16
      %42 = vsyncadd [#allocation6], %s41
      %s44 = sshll.u32 [#allocation7], 4
      %s45 = int_to_ptr.vmem [resolvable:$true] %s44
      %47 = dma.hbm_to_vmem [thread:$0]  %s3, 16, %s45, [#allocation6]
    $region17: #{tpu_custom_call.1} parent=1 // pred_fallthru
      _
    // Predicated region
    $region18: #{tpu_custom_call.1} parent=1 // pred_check
      _
    $region19: #{tpu_custom_call.1} parent=1 // pred_check_branch
      %49 = sbr.rel (0) target = $region21
    $region20: #{tpu_custom_call.1} parent=1 // pred_region
      %50 = dma.done [#allocation3], 128
    $region21: #{tpu_custom_call.1} parent=1 // pred_fallthru
      _
    // Predicated region
    $region22: #{tpu_custom_call.1} parent=1 // pred_check
      _
    $region23: #{tpu_custom_call.1} parent=1 // pred_check_branch
      %52 = sbr.rel (0) target = $region25
    $region24: #{tpu_custom_call.1} parent=1 // pred_region
      %53 = dma.done [#allocation6], 16
    $region25: #{tpu_custom_call.1} parent=1 // pred_fallthru
      _
    // Predicated region
    $region26: #{tpu_custom_call.1} parent=1 // pred_check
      _
    $region27: #{tpu_custom_call.1} parent=1 // pred_check_branch
      %55 = sbr.rel (0) target = $region29
    $region28: #{tpu_custom_call.1} parent=1 // pred_region
      %56 = dma.done [#allocation6], 16
    $region29: #{tpu_custom_call.1} parent=1 // pred_fallthru
      _
    %v57 = vld [vmem:[#allocation2] sm:$0xff]
    %v58 = vld [vmem:[%s0] sm:$0x1]
    %v59 = vld [vmem:[#allocation5] sm:$0x1]
    %v60 = vld [vmem:[#allocation7] sm:$0x1]
    %v61 = vlaneseq
    %v62 = vshrl.u32 %v61, 7
    %v63 = vlaneseq
    %v64 = vshrl.u32 %v63, 7
    %v65 = vsub.s32 0, %v64
    %v66 = vrot.slane %v58, %v65
    %vm67 = vcmp.eq.s32.totalorder %v62, %v66
    %v68 = vsel %vm67, 1, 0
    %v69 = vcvt.s32.f32 %v68
    %vm70 = vcmask 64512
    %v71 = vsel %vm70, %v69, 0.0
    %72 = vadd.xlane.f32.xlu0 %v71
    %v73 = vpop.xlane.xlu0 %72
    %v74 = vmax.f32 %v73, 1.0
    %v75 = vrcp.pop %v74
    %v76 = vmul.f32 1.0, %v75
    %v77 = vsub.f32 %v73, 1.0
    %v78 = vmax.f32 %v77, 1.0
    %v79 = vrcp.pop %v78
    %v80 = vmul.f32 1.0, %v79
    %v81 = vrot.slane %v57, 4
    %v82 = vadd.f32 %v57, %v81
    %v83 = vrot.slane %v82, 2
    %v84 = vadd.f32 %v82, %v83
    %v85 = vrot.slane %v84, 1
    %v86 = vadd.f32 %v84, %v85
    %v87 = vrcp.pop 8.0
    %v88 = vmul.f32 %v86, %v87
    %v89 = vsub.f32 %v57, %v88
    %v91 = vsel %vm70, %v69, 0
    %93 = vmatprep.subr.mxu0 0.0
    %94 = vmatpush1.msra.mxu0 0.0
    %95 = vmatprep.subr.mxu0 0.0
    %96 = vmatpush1.msra.mxu0 0.0
    %97 = vmatprep.subr.mxu0 0.0
    %98 = vmatpush1.msra.mxu0 0.0
    %99 = vmatprep.subr.mxu0 0.0
    %100 = vmatpush1.msra.mxu0 0.0
    %101 = vmatprep.subr.mxu0 0.0
    %102 = vmatpush1.msra.mxu0 0.0
    %103 = vmatprep.subr.mxu0 0.0
    %104 = vmatpush1.msra.mxu0 0.0
    %105 = vmatprep.subr.mxu0 0.0
    %106 = vmatpush1.msra.mxu0 0.0
    %107 = vmatprep.subr.mxu0 0.0
    %108 = vmatpush1.msra.mxu0 0.0
    %109 = vmatprep.subr.mxu0 0.0
    %110 = vmatpush1.msra.mxu0 0.0
    %111 = vmatprep.subr.mxu0 0.0
    %112 = vmatpush1.msra.mxu0 0.0
    %113 = vmatprep.subr.mxu0 0.0
    %114 = vmatpush1.msra.mxu0 0.0
    %115 = vmatprep.subr.mxu0 0.0
    %116 = vmatpush1.msra.mxu0 0.0
    %117 = vmatprep.subr.mxu0 0.0
    %118 = vmatpush1.msra.mxu0 0.0
    %119 = vmatprep.subr.mxu0 0.0
    %120 = vmatpush1.msra.mxu0 0.0
    %121 = vmatprep.subr.mxu0 0.0
    %122 = vmatpush1.msra.mxu0 0.0
    %123 = vmatprep.subr.mxu0 0.0
    %124 = vmatpush1.msra.mxu0 %v89
    %125 = vmatprep.subr.mxu0 0.0
    %126 = vmatpush2.msra.mxu0 0.0
    %127 = vmatprep.subr.mxu0 0.0
    %128 = vmatpush2.msra.mxu0 0.0
    %129 = vmatprep.subr.mxu0 0.0
    %130 = vmatpush2.msra.mxu0 0.0
    %131 = vmatprep.subr.mxu0 0.0
    %132 = vmatpush2.msra.mxu0 0.0
    %133 = vmatprep.subr.mxu0 0.0
    %134 = vmatpush2.msra.mxu0 0.0
    %135 = vmatprep.subr.mxu0 0.0
    %136 = vmatpush2.msra.mxu0 0.0
    %137 = vmatprep.subr.mxu0 0.0
    %138 = vmatpush2.msra.mxu0 0.0
    %139 = vmatprep.subr.mxu0 0.0
    %140 = vmatpush2.msra.mxu0 0.0
    %141 = vmatprep.subr.mxu0 0.0
    %142 = vmatpush2.msra.mxu0 0.0
    %143 = vmatprep.subr.mxu0 0.0
    %144 = vmatpush2.msra.mxu0 0.0
    %145 = vmatprep.subr.mxu0 0.0
    %146 = vmatpush2.msra.mxu0 0.0
    %147 = vmatprep.subr.mxu0 0.0
    %148 = vmatpush2.msra.mxu0 0.0
    %149 = vmatprep.subr.mxu0 0.0
    %150 = vmatpush2.msra.mxu0 0.0
    %151 = vmatprep.subr.mxu0 0.0
    %152 = vmatpush2.msra.mxu0 0.0
    %153 = vmatprep.subr.mxu0 0.0
    %154 = vmatpush2.msra.mxu0 0.0
    %155 = vmatprep.subr.mxu0 0.0
    %156 = vmatpush2.msra.mxu0 0.0
    %157 = vmatprep.mubr.f32.mxu0 0.0
    %158 = vmatmul.mubr.f32.gmra.mxu0 %v91
    %v159 = vpop.f32.mrf.mxu0
    %v160 = vadd.f32 0.0, %v159
    %v161 = vpop.f32.mrf.mxu0
    %162 = vdwg.mxu0
    %v163 = vmul.f32 %v89, %v89
    %164 = vmatprep.subr.mxu0 0.0
    %165 = vmatpush1.msra.mxu0 0.0
    %166 = vmatprep.subr.mxu0 0.0
    %167 = vmatpush1.msra.mxu0 0.0
    %168 = vmatprep.subr.mxu0 0.0
    %169 = vmatpush1.msra.mxu0 0.0
    %170 = vmatprep.subr.mxu0 0.0
    %171 = vmatpush1.msra.mxu0 0.0
    %172 = vmatprep.subr.mxu0 0.0
    %173 = vmatpush1.msra.mxu0 0.0
    %174 = vmatprep.subr.mxu0 0.0
    %175 = vmatpush1.msra.mxu0 0.0
    %176 = vmatprep.subr.mxu0 0.0
    %177 = vmatpush1.msra.mxu0 0.0
    %178 = vmatprep.subr.mxu0 0.0
    %179 = vmatpush1.msra.mxu0 0.0
    %180 = vmatprep.subr.mxu0 0.0
    %181 = vmatpush1.msra.mxu0 0.0
    %182 = vmatprep.subr.mxu0 0.0
    %183 = vmatpush1.msra.mxu0 0.0
    %184 = vmatprep.subr.mxu0 0.0
    %185 = vmatpush1.msra.mxu0 0.0
    %186 = vmatprep.subr.mxu0 0.0
    %187 = vmatpush1.msra.mxu0 0.0
    %188 = vmatprep.subr.mxu0 0.0
    %189 = vmatpush1.msra.mxu0 0.0
    %190 = vmatprep.subr.mxu0 0.0
    %191 = vmatpush1.msra.mxu0 0.0
    %192 = vmatprep.subr.mxu0 0.0
    %193 = vmatpush1.msra.mxu0 0.0
    %194 = vmatprep.subr.mxu0 0.0
    %195 = vmatpush1.msra.mxu0 %v163
    %196 = vmatprep.subr.mxu0 0.0
    %197 = vmatpush2.msra.mxu0 0.0
    %198 = vmatprep.subr.mxu0 0.0
    %199 = vmatpush2.msra.mxu0 0.0
    %200 = vmatprep.subr.mxu0 0.0
    %201 = vmatpush2.msra.mxu0 0.0
    %202 = vmatprep.subr.mxu0 0.0
    %203 = vmatpush2.msra.mxu0 0.0
    %204 = vmatprep.subr.mxu0 0.0
    %205 = vmatpush2.msra.mxu0 0.0
    %206 = vmatprep.subr.mxu0 0.0
    %207 = vmatpush2.msra.mxu0 0.0
    %208 = vmatprep.subr.mxu0 0.0
    %209 = vmatpush2.msra.mxu0 0.0
    %210 = vmatprep.subr.mxu0 0.0
    %211 = vmatpush2.msra.mxu0 0.0
    %212 = vmatprep.subr.mxu0 0.0
    %213 = vmatpush2.msra.mxu0 0.0
    %214 = vmatprep.subr.mxu0 0.0
    %215 = vmatpush2.msra.mxu0 0.0
    %216 = vmatprep.subr.mxu0 0.0
    %217 = vmatpush2.msra.mxu0 0.0
    %218 = vmatprep.subr.mxu0 0.0
    %219 = vmatpush2.msra.mxu0 0.0
    %220 = vmatprep.subr.mxu0 0.0
    %221 = vmatpush2.msra.mxu0 0.0
    %222 = vmatprep.subr.mxu0 0.0
    %223 = vmatpush2.msra.mxu0 0.0
    %224 = vmatprep.subr.mxu0 0.0
    %225 = vmatpush2.msra.mxu0 0.0
    %226 = vmatprep.subr.mxu0 0.0
    %227 = vmatpush2.msra.mxu0 0.0
    %228 = vmatprep.mubr.f32.mxu0 0.0
    %229 = vmatmul.mubr.f32.gmra.mxu0 %v91
    %v230 = vpop.f32.mrf.mxu0
    %v231 = vadd.f32 0.0, %v230
    %v232 = vpop.f32.mrf.mxu0
    %233 = vdwg.mxu0
    %v234 = vmul.f32 %v160, %v76
    %v235 = vmul.f32 %v73, %v234
    %v236 = vmul.f32 %v235, %v234
    %v237 = vsub.f32 %v231, %v236
    %v238 = vmul.f32 %v237, %v80
    %v239 = vadd.f32 %v234, %v88
    %v240 = vmax.f32 %v238, 0.0
    %v241 = vrsqrt.pop %v240
    %v242 = vmul.f32 %v240, %v241
    %vm243 = vcmp.eq.f32.partialorder %v240, inf
    %v244 = vsel %vm243, %v240, %v242
    %vm245 = vcmp.eq.f32.partialorder %v240, 0.0
    %v246 = vand.u32 %v240, 2147483648
    %v247 = vsel %vm245, %v246, %v244
    %vm248 = vcmp.ge.f32.partialorder %v73, 2.0
    %v249 = vsel %vm248, 1, 0
    %v250 = vcvt.s32.f32 %v249
    %vm251 = vcmask 7168
    %v252 = vsel %vm251, %v250, 0.0
    %253 = vadd.xlane.f32.xlu0 %v252
    %v254 = vpop.xlane.xlu0 %253
    %v255 = vrot.slane %v254, 4
    %v256 = vadd.f32 %v254, %v255
    %v257 = vrot.slane %v256, 2
    %v258 = vadd.f32 %v256, %v257
    %v259 = vrot.slane %v258, 1
    %v260 = vadd.f32 %v258, %v259
    %s261 = vtos %v260
    %v262 = vstv %s261
    %v263 = vmax.f32 %v262, 1.0
    %v264 = vrcp.pop %v263
    %v265 = vmul.f32 1.0, %v264
    %v266 = vmul.f32 %v250, %v239
    %v267 = vrot.slane %v266, 4
    %v268 = vadd.f32 %v266, %v267
    %v269 = vrot.slane %v268, 2
    %v270 = vadd.f32 %v268, %v269
    %v271 = vrot.slane %v270, 1
    %v272 = vadd.f32 %v270, %v271
    %v273 = vmul.f32 %v272, %v265
    %v274 = vmul.f32 %v250, %v247
    %v275 = vrot.slane %v274, 4
    %v276 = vadd.f32 %v274, %v275
    %v277 = vrot.slane %v276, 2
    %v278 = vadd.f32 %v276, %v277
    %v279 = vrot.slane %v278, 1
    %v280 = vadd.f32 %v278, %v279
    %v281 = vmul.f32 %v280, %v265
    %v282 = vmul.f32 %v59, 0.9992
    %v283 = vmul.f32 %v273, 0.0008
    %v284 = vadd.f32 %v282, %v283
    %v285 = vmul.f32 %v60, 0.9992
    %v286 = vmul.f32 %v281, 0.0008
    %v287 = vadd.f32 %v285, %v286
    %288 = vst [vmem:[#allocation9] sm:$0x1] %v284
    %289 = vst [vmem:[#allocation11] sm:$0x1] %v287
    %v291 = vlaneseq
    %v292 = vshrl.u32 %v291, 7
    %v293 = vsub.s32 0, %v292
    %v294 = vrot.slane %v284, %v293
    %v296 = vsub.f32 %v239, %v294
    %v298 = vlaneseq
    %v299 = vshrl.u32 %v298, 7
    %v300 = vsub.s32 0, %v299
    %v301 = vrot.slane %v287, %v300
    %v303 = vsub.f32 %v247, %v301
    %v304 = vmul.f32 %v296, %v296
    %v305 = vmul.f32 %v303, %v303
    %v306 = vadd.f32 %v304, %v305
    %v307 = vmul.f32 %v250, %v306
    %308 = vadd.xlane.f32.xlu0 %v307
    %v309 = vpop.xlane.xlu0 %308
    %v310 = vrot.slane %v309, 4
    %v311 = vadd.f32 %v309, %v310
    %v312 = vrot.slane %v311, 2
    %v313 = vadd.f32 %v311, %v312
    %v314 = vrot.slane %v313, 1
    %v315 = vadd.f32 %v313, %v314
    %s316 = vtos %v315
    %s317 = vtos %v265
    %s318 = smul.f32 %s317, 0.5
    %s319 = smul.f32 %s316, %s318
    %v320 = vlaneseq
    %v321 = vand.u32 %v320, 127
    %vm322 = vcmp.eq.s32.totalorder %v321, 0
    %v323 = vstv %s319
    %v324 = vsel %vm322, %v323, 0.0
    %325 = vst [vmem:[#allocation8] sm:$0x1] %v324
    // Predicated region
    $region30: #{tpu_custom_call.1} parent=1 // pred_check
      _
    $region31: #{tpu_custom_call.1} parent=1 // pred_check_branch
      %327 = sbr.rel (0) target = $region33
    $region32: #{tpu_custom_call.1} parent=1 // pred_region
      %s329 = ssub.s32 16, 16
      %330 = vsyncadd [#allocation4], %s329
      %s332 = sshll.u32 [#allocation8], 4
      %s333 = int_to_ptr.vmem [resolvable:$true] %s332
      %335 = dma.vmem_to_hbm [thread:$0]  %s333, 16, %s4, [#allocation4]
    $region33: #{tpu_custom_call.1} parent=1 // pred_fallthru
      _
    // Predicated region
    $region34: #{tpu_custom_call.1} parent=1 // pred_check
      _
    $region35: #{tpu_custom_call.1} parent=1 // pred_check_branch
      %337 = sbr.rel (0) target = $region37
    $region36: #{tpu_custom_call.1} parent=1 // pred_region
      %s339 = ssub.s32 16, 16
      %340 = vsyncadd [#allocation10], %s339
      %s342 = sshll.u32 [#allocation9], 4
      %s343 = int_to_ptr.vmem [resolvable:$true] %s342
      %345 = dma.vmem_to_hbm [thread:$0]  %s343, 16, %s5, [#allocation10]
    $region37: #{tpu_custom_call.1} parent=1 // pred_fallthru
      _
    // Predicated region
    $region38: #{tpu_custom_call.1} parent=1 // pred_check
      _
    $region39: #{tpu_custom_call.1} parent=1 // pred_check_branch
      %347 = sbr.rel (0) target = $region41
    $region40: #{tpu_custom_call.1} parent=1 // pred_region
      %s349 = ssub.s32 16, 16
      %350 = vsyncadd [#allocation10], %s349
      %s352 = sshll.u32 [#allocation11], 4
      %s353 = int_to_ptr.vmem [resolvable:$true] %s352
      %355 = dma.vmem_to_hbm [thread:$0]  %s353, 16, %s6, [#allocation10]
    $region41: #{tpu_custom_call.1} parent=1 // pred_fallthru
      _
    // Predicated region
    $region42: #{tpu_custom_call.1} parent=1 // pred_check
      _
    $region43: #{tpu_custom_call.1} parent=1 // pred_check_branch
      %357 = sbr.rel (0) target = $region45
    $region44: #{tpu_custom_call.1} parent=1 // pred_region
      %358 = dma.done [#allocation4], 16
    $region45: #{tpu_custom_call.1} parent=1 // pred_fallthru
      _
    // Predicated region
    $region46: #{tpu_custom_call.1} parent=1 // pred_check
      _
    $region47: #{tpu_custom_call.1} parent=1 // pred_check_branch
      %360 = sbr.rel (0) target = $region49
    $region48: #{tpu_custom_call.1} parent=1 // pred_region
      %361 = dma.done [#allocation10], 16
    $region49: #{tpu_custom_call.1} parent=1 // pred_fallthru
      _
    // Predicated region
    $region50: #{tpu_custom_call.1} parent=1 // pred_check
      _
    $region51: #{tpu_custom_call.1} parent=1 // pred_check_branch
      %363 = sbr.rel (0) target = $region53
    $region52: #{tpu_custom_call.1} parent=1 // pred_region
      %364 = dma.done [#allocation10], 16
    $region53: #{tpu_custom_call.1} parent=1 // pred_fallthru
      _
    %365 = vsyncpa [#allocation3], 1
    %366 = vsyncpa [#allocation6], 1
    %367 = vsyncpa [#allocation4], 1
    %368 = vsyncpa [#allocation10], 1

</llo_original>
